<compile_context>
chip_gen: v7x
topology: tpu7x:2x2x1
jax: 0.10.0
libtpu: 0.0.40
codegen_flags: <defaults>
</compile_context>

<pallas_src>
import functools

import jax
import jax.numpy as jnp
from jax.experimental import pallas as pl
from jax.experimental.pallas import tpu as pltpu

LANE = 128  # TPU lane width


def _round_up(x, m):
    return ((x + m - 1) // m) * m


# ----------------------------------------------------------------------------
# Pallas kernel: fused fc + ReLU + GRUCell + output projection (one batch tile)
# ----------------------------------------------------------------------------
def agent_net_kernel(obs_ref, h_ref,
                     w_fc_ref, b_fc_ref,
                     w_ih_ref, b_ih_ref,
                     w_hh_ref, b_hh_ref,
                     w_out_ref, b_out_ref,
                     q_ref, h_new_ref):
    HP = h_ref.shape[-1]  # lane-padded hidden width (128)

    h = h_ref[...]                      # carried hidden state stays f32
    h_bf = h.astype(jnp.bfloat16)       # bf16 copy for the MXU

    # --- fc + ReLU: bf16 operands, f32 accumulation -------------------------
    x = jnp.dot(obs_ref[...], w_fc_ref[...], preferred_element_type=jnp.float32)
    x = jnp.maximum(x + b_fc_ref[...], 0.0)

    # --- GRUCell (torch gate order r|z|n, each gate padded to HP lanes) -----
    gi = jnp.dot(x.astype(jnp.bfloat16), w_ih_ref[...],
                 preferred_element_type=jnp.float32) + b_ih_ref[...]
    gh = jnp.dot(h_bf, w_hh_ref[...],
                 preferred_element_type=jnp.float32) + b_hh_ref[...]

    # Gate slices are lane-aligned (multiples of 128) -> whole-vreg views.
    r = jax.nn.sigmoid(gi[:, 0:HP] + gh[:, 0:HP])
    z = jax.nn.sigmoid(gi[:, HP:2 * HP] + gh[:, HP:2 * HP])
    n = jnp.tanh(gi[:, 2 * HP:3 * HP] + r * gh[:, 2 * HP:3 * HP])
    h_new = (1.0 - z) * n + z * h       # f32 recurrence

    # --- output projection (lane-dense padded q) -----------------------------
    q = jnp.dot(h_new.astype(jnp.bfloat16), w_out_ref[...],
                preferred_element_type=jnp.float32) + b_out_ref[...]

    q_ref[...] = q
    h_new_ref[...] = h_new


# ----------------------------------------------------------------------------
# Parameter preparation: pad to lane-aligned widths, cast matmul weights bf16
# ----------------------------------------------------------------------------
def prepare_kernel_params(params, input_dim, hidden_dim, n_actions,
                          hp=LANE, ap=LANE):
    H = hidden_dim

    def pad_to(a, shape):
        return jnp.pad(a, [(0, t - s) for s, t in zip(a.shape, shape)])

    def pad_gate_w(w):  # (H, 3H) -> (HP, 3*HP), gate-blocked at 0/HP/2HP
        parts = [pad_to(w[:, g * H:(g + 1) * H], (hp, hp)) for g in range(3)]
        return jnp.concatenate(parts, axis=1)

    def pad_gate_b(b):  # (1, 3H) -> (1, 3*HP)
        parts = [pad_to(b[:, g * H:(g + 1) * H], (1, hp)) for g in range(3)]
        return jnp.concatenate(parts, axis=1)

    return {
        "w_fc":  pad_to(params["w_fc"], (input_dim, hp)).astype(jnp.bfloat16),
        "b_fc":  pad_to(params["b_fc"], (1, hp)).astype(jnp.float32),
        "w_ih":  pad_gate_w(params["w_ih"]).astype(jnp.bfloat16),
        "b_ih":  pad_gate_b(params["b_ih"]).astype(jnp.float32),
        "w_hh":  pad_gate_w(params["w_hh"]).astype(jnp.bfloat16),
        "b_hh":  pad_gate_b(params["b_hh"]).astype(jnp.float32),
        "w_out": pad_to(params["w_out"], (hp, ap)).astype(jnp.bfloat16),
        "b_out": pad_to(params["b_out"], (1, ap)).astype(jnp.float32),
    }


# ----------------------------------------------------------------------------
# Wrapper
# ----------------------------------------------------------------------------
def agent_net_forward(obs, hidden_state, kparams, hidden_dim, n_actions,
                      hp=LANE, ap=LANE):
    """obs: (B, obs_dim+n_actions+n_agents); hidden_state reshapable to (-1, H).
    kparams: output of prepare_kernel_params. Returns (q, h) like AgentNet."""
    h0 = hidden_state.reshape(-1, hidden_dim).astype(jnp.float32)
    B, in_dim = obs.shape

    # Batch tile size: big tiles for pipelining, multiple of 16 (bf16 sublanes).
    block_b = 512 if B >= 512 else _round_up(B, 16)
    B_pad = _round_up(B, block_b)
    grid = (B_pad // block_b,)

    obs_p = jnp.pad(obs.astype(jnp.bfloat16), ((0, B_pad - B), (0, 0)))
    h0_p = jnp.pad(h0, ((0, B_pad - B), (0, hp - hidden_dim)))

    bmap = lambda i: (i, 0)          # batch-tiled activations
    wmap = lambda i: (0, 0)          # weights resident across grid steps

    in_specs = [
        pl.BlockSpec((block_b, in_dim), bmap),              # obs
        pl.BlockSpec((block_b, hp), bmap),                  # h0
        pl.BlockSpec(kparams["w_fc"].shape, wmap),
        pl.BlockSpec(kparams["b_fc"].shape, wmap),
        pl.BlockSpec(kparams["w_ih"].shape, wmap),
        pl.BlockSpec(kparams["b_ih"].shape, wmap),
        pl.BlockSpec(kparams["w_hh"].shape, wmap),
        pl.BlockSpec(kparams["b_hh"].shape, wmap),
        pl.BlockSpec(kparams["w_out"].shape, wmap),
        pl.BlockSpec(kparams["b_out"].shape, wmap),
    ]
    out_specs = (
        pl.BlockSpec((block_b, ap), bmap),                  # q (lane-dense pad)
        pl.BlockSpec((block_b, hp), bmap),                  # h_new
    )
    out_shape = (
        jax.ShapeDtypeStruct((B_pad, ap), jnp.float32),
        jax.ShapeDtypeStruct((B_pad, hp), jnp.float32),
    )

    weight_args = (kparams["w_fc"], kparams["b_fc"],
                   kparams["w_ih"], kparams["b_ih"],
                   kparams["w_hh"], kparams["b_hh"],
                   kparams["w_out"], kparams["b_out"])
    bytes_accessed = int(
        obs_p.size * 2 + h0_p.size * 4
        + sum(int(a.size) * a.dtype.itemsize for a in weight_args)
        + B_pad * (ap + hp) * 4)
    flops = int(2 * B_pad * (in_dim * hp + 2 * hp * 3 * hp + hp * ap))
    transcendentals = int(3 * B_pad * hp)

    kernel = pl.pallas_call(
        agent_net_kernel,
        grid=grid,
        in_specs=in_specs,
        out_specs=out_specs,
        out_shape=out_shape,
        input_output_aliases={1: 1},           # h0 buffer reused for h_new
        compiler_params=pltpu.CompilerParams(
            dimension_semantics=("parallel",),
            vmem_limit_bytes=32 * 1024 * 1024),
        cost_estimate=pl.CostEstimate(
            flops=flops,
            transcendentals=transcendentals,
            bytes_accessed=bytes_accessed),
    )
    q_p, h_p = kernel(obs_p, h0_p, *weight_args)

    return q_p[:B, :n_actions], h_p[:B, :hidden_dim]


# ----------------------------------------------------------------------------
# Deterministic parameter init (shapes follow AgentNet.__init__, torch layout
# pre-transposed to (in, out); GRU gate order [r|z|n] like torch.nn.GRUCell)
# ----------------------------------------------------------------------------
def init_params(key, input_shape, hidden_dim, n_actions):
    ks = jax.random.split(key, 8)
    s = 0.1
    return {
        "w_fc":  s * jax.random.normal(ks[0], (input_shape, hidden_dim), jnp.float32),
        "b_fc":  s * jax.random.normal(ks[1], (1, hidden_dim), jnp.float32),
        "w_ih":  s * jax.random.normal(ks[2], (hidden_dim, 3 * hidden_dim), jnp.float32),
        "b_ih":  s * jax.random.normal(ks[3], (1, 3 * hidden_dim), jnp.float32),
        "w_hh":  s * jax.random.normal(ks[4], (hidden_dim, 3 * hidden_dim), jnp.float32),
        "b_hh":  s * jax.random.normal(ks[5], (1, 3 * hidden_dim), jnp.float32),
        "w_out": s * jax.random.normal(ks[6], (hidden_dim, n_actions), jnp.float32),
        "b_out": s * jax.random.normal(ks[7], (1, n_actions), jnp.float32),
    }


# Pure-JAX reference (mirrors torch.nn.GRUCell). matmul_dtype lets us mirror
# the kernel's bf16 matmul operands for a tight-tolerance check.
def agent_net_ref(obs, hidden_state, params, hidden_dim,
                  matmul_dtype=jnp.float32):
    h = hidden_state.reshape(-1, hidden_dim).astype(jnp.float32)

    def mm(a, w):
        return jnp.dot(a.astype(matmul_dtype), w.astype(matmul_dtype),
                       preferred_element_type=jnp.float32)

    x = jnp.maximum(mm(obs, params["w_fc"]) + params["b_fc"], 0.0)
    gi = mm(x, params["w_ih"]) + params["b_ih"]
    gh = mm(h, params["w_hh"]) + params["b_hh"]
    H = hidden_dim
    r = jax.nn.sigmoid(gi[:, :H] + gh[:, :H])
    z = jax.nn.sigmoid(gi[:, H:2 * H] + gh[:, H:2 * H])
    n = jnp.tanh(gi[:, 2 * H:] + r * gh[:, 2 * H:])
    h_new = (1.0 - z) * n + z * h
    q = mm(h_new, params["w_out"]) + params["b_out"]
    return q, h_new


if __name__ == "__main__":
    # Small args consistent with the module's forward.
    obs_dim, n_actions, n_agents, hidden_dim = 22, 5, 3, 32
    input_shape = obs_dim + n_actions + n_agents  # 30
    batch = 8

    key = jax.random.PRNGKey(0)
    k_obs, k_h, k_p = jax.random.split(key, 3)

    obs = jax.random.normal(k_obs, (batch, input_shape), jnp.float32)
    hidden_state = jax.random.normal(k_h, (batch, hidden_dim), jnp.float32)
    params = init_params(k_p, input_shape, hidden_dim, n_actions)
    kparams = prepare_kernel_params(params, input_shape, hidden_dim, n_actions)

    q, h = agent_net_forward(obs, hidden_state, kparams, hidden_dim, n_actions)
    jax.block_until_ready((q, h))

    assert q.shape == (batch, n_actions) and h.shape == (batch, hidden_dim)

    # Tight check vs. a reference that mirrors the kernel's bf16 matmul operands.
    q_bf, h_bf = agent_net_ref(obs, hidden_state, params, hidden_dim,
                               matmul_dtype=jnp.bfloat16)
    assert jnp.allclose(q, q_bf, atol=2e-3, rtol=2e-3)
    assert jnp.allclose(h, h_bf, atol=2e-3, rtol=2e-3)

    # Loose sanity check vs. the full-f32 torch-equivalent reference.
    q_f32, h_f32 = agent_net_ref(obs, hidden_state, params, hidden_dim)
    assert jnp.allclose(q, q_f32, atol=5e-2, rtol=5e-2)
    assert jnp.allclose(h, h_f32, atol=5e-2, rtol=5e-2)

    print("KERNEL_OK")
</pallas_src>

<mosaic_0001>
module attributes {stable_mosaic.version = 11 : i64} {
  func.func @agent_net_kernel(%arg0: i32, %arg1: memref<16x30xbf16, #tpu.memory_space<vmem>>, %arg2: memref<16x128xf32, #tpu.memory_space<vmem>>, %arg3: memref<30x128xbf16, #tpu.memory_space<vmem>>, %arg4: memref<1x128xf32, #tpu.memory_space<vmem>>, %arg5: memref<128x384xbf16, #tpu.memory_space<vmem>>, %arg6: memref<1x384xf32, #tpu.memory_space<vmem>>, %arg7: memref<128x384xbf16, #tpu.memory_space<vmem>>, %arg8: memref<1x384xf32, #tpu.memory_space<vmem>>, %arg9: memref<128x128xbf16, #tpu.memory_space<vmem>>, %arg10: memref<1x128xf32, #tpu.memory_space<vmem>>, %arg11: memref<16x128xf32, #tpu.memory_space<vmem>>, %arg12: memref<16x128xf32, #tpu.memory_space<vmem>>) attributes {dimension_semantics = [#tpu.dimension_semantics<parallel>], iteration_bounds = array<i64: 1>, scalar_prefetch = 0 : i64, scratch_operands = 0 : i64, tpu.core_type = #tpu.core_type<tc>, window_params = [{transform_indices = @transform_0, window_bounds = array<i64: 16, 30>}, {transform_indices = @transform_1, window_bounds = array<i64: 16, 128>}, {pipeline_mode = #tpu.pipeline_mode<synchronous>, transform_indices = @transform_2, window_bounds = array<i64: 30, 128>}, {pipeline_mode = #tpu.pipeline_mode<synchronous>, transform_indices = @transform_3, window_bounds = array<i64: 1, 128>}, {pipeline_mode = #tpu.pipeline_mode<synchronous>, transform_indices = @transform_4, window_bounds = array<i64: 128, 384>}, {pipeline_mode = #tpu.pipeline_mode<synchronous>, transform_indices = @transform_5, window_bounds = array<i64: 1, 384>}, {pipeline_mode = #tpu.pipeline_mode<synchronous>, transform_indices = @transform_6, window_bounds = array<i64: 128, 384>}, {pipeline_mode = #tpu.pipeline_mode<synchronous>, transform_indices = @transform_7, window_bounds = array<i64: 1, 384>}, {pipeline_mode = #tpu.pipeline_mode<synchronous>, transform_indices = @transform_8, window_bounds = array<i64: 128, 128>}, {pipeline_mode = #tpu.pipeline_mode<synchronous>, transform_indices = @transform_9, window_bounds = array<i64: 1, 128>}, {transform_indices = @transform_10, window_bounds = array<i64: 16, 128>}, {transform_indices = @transform_11, window_bounds = array<i64: 16, 128>}]} {
    %c0 = arith.constant 0 : index
    %c0_0 = arith.constant 0 : index
    %0 = vector.load %arg2[%c0, %c0_0] : memref<16x128xf32, #tpu.memory_space<vmem>>, vector<16x128xf32>
    %1 = arith.truncf %0 : vector<16x128xf32> to vector<16x128xbf16>
    %c0_1 = arith.constant 0 : index
    %c0_2 = arith.constant 0 : index
    %2 = vector.load %arg1[%c0_1, %c0_2] : memref<16x30xbf16, #tpu.memory_space<vmem>>, vector<16x30xbf16>
    %c0_3 = arith.constant 0 : index
    %c0_4 = arith.constant 0 : index
    %3 = vector.load %arg3[%c0_3, %c0_4] : memref<30x128xbf16, #tpu.memory_space<vmem>>, vector<30x128xbf16>
    %cst = arith.constant dense<0.000000e+00> : vector<16x128xf32>
    %4 = tpu.matmul %2, %3, %cst {dimension_numbers = #tpu.dot_dimension_numbers<[1], [0], [0], [1], [0, 0, 1, 1], [], []>} : vector<16x30xbf16>, vector<30x128xbf16>, vector<16x128xf32> -> vector<16x128xf32>
    %c0_5 = arith.constant 0 : index
    %c0_6 = arith.constant 0 : index
    %5 = vector.load %arg4[%c0_5, %c0_6] : memref<1x128xf32, #tpu.memory_space<vmem>>, vector<1x128xf32>
    %6 = vector.broadcast %5 : vector<1x128xf32> to vector<16x128xf32>
    %7 = arith.addf %4, %6 : vector<16x128xf32>
    %cst_7 = arith.constant 0.000000e+00 : f32
    %8 = vector.broadcast %cst_7 : f32 to vector<16x128xf32>
    %9 = arith.maximumf %7, %8 : vector<16x128xf32>
    %10 = arith.truncf %9 : vector<16x128xf32> to vector<16x128xbf16>
    %c0_8 = arith.constant 0 : index
    %c0_9 = arith.constant 0 : index
    %11 = vector.load %arg5[%c0_8, %c0_9] : memref<128x384xbf16, #tpu.memory_space<vmem>>, vector<128x384xbf16>
    %cst_10 = arith.constant dense<0.000000e+00> : vector<16x384xf32>
    %12 = tpu.matmul %10, %11, %cst_10 {dimension_numbers = #tpu.dot_dimension_numbers<[1], [0], [0], [1], [0, 0, 1, 1], [], []>} : vector<16x128xbf16>, vector<128x384xbf16>, vector<16x384xf32> -> vector<16x384xf32>
    %c0_11 = arith.constant 0 : index
    %c0_12 = arith.constant 0 : index
    %13 = vector.load %arg6[%c0_11, %c0_12] : memref<1x384xf32, #tpu.memory_space<vmem>>, vector<1x384xf32>
    %14 = vector.broadcast %13 : vector<1x384xf32> to vector<16x384xf32>
    %15 = arith.addf %12, %14 : vector<16x384xf32>
    %c0_13 = arith.constant 0 : index
    %c0_14 = arith.constant 0 : index
    %16 = vector.load %arg7[%c0_13, %c0_14] : memref<128x384xbf16, #tpu.memory_space<vmem>>, vector<128x384xbf16>
    %cst_15 = arith.constant dense<0.000000e+00> : vector<16x384xf32>
    %17 = tpu.matmul %1, %16, %cst_15 {dimension_numbers = #tpu.dot_dimension_numbers<[1], [0], [0], [1], [0, 0, 1, 1], [], []>} : vector<16x128xbf16>, vector<128x384xbf16>, vector<16x384xf32> -> vector<16x384xf32>
    %c0_16 = arith.constant 0 : index
    %c0_17 = arith.constant 0 : index
    %18 = vector.load %arg8[%c0_16, %c0_17] : memref<1x384xf32, #tpu.memory_space<vmem>>, vector<1x384xf32>
    %19 = vector.broadcast %18 : vector<1x384xf32> to vector<16x384xf32>
    %20 = arith.addf %17, %19 : vector<16x384xf32>
    %21 = vector.extract_strided_slice %15 {offsets = [0, 0], sizes = [16, 128], strides = [1, 1]} : vector<16x384xf32> to vector<16x128xf32>
    %22 = vector.extract_strided_slice %20 {offsets = [0, 0], sizes = [16, 128], strides = [1, 1]} : vector<16x384xf32> to vector<16x128xf32>
    %23 = arith.addf %21, %22 : vector<16x128xf32>
    %24 = arith.negf %23 : vector<16x128xf32>
    %25 = math.exp %24 : vector<16x128xf32>
    %cst_18 = arith.constant 1.000000e+00 : f32
    %26 = vector.broadcast %cst_18 : f32 to vector<16x128xf32>
    %27 = arith.addf %26, %25 : vector<16x128xf32>
    %28 = arith.divf %26, %27 : vector<16x128xf32>
    %29 = vector.extract_strided_slice %15 {offsets = [0, 128], sizes = [16, 128], strides = [1, 1]} : vector<16x384xf32> to vector<16x128xf32>
    %30 = vector.extract_strided_slice %20 {offsets = [0, 128], sizes = [16, 128], strides = [1, 1]} : vector<16x384xf32> to vector<16x128xf32>
    %31 = arith.addf %29, %30 : vector<16x128xf32>
    %32 = arith.negf %31 : vector<16x128xf32>
    %33 = math.exp %32 : vector<16x128xf32>
    %cst_19 = arith.constant 1.000000e+00 : f32
    %34 = vector.broadcast %cst_19 : f32 to vector<16x128xf32>
    %35 = arith.addf %34, %33 : vector<16x128xf32>
    %36 = arith.divf %34, %35 : vector<16x128xf32>
    %37 = vector.extract_strided_slice %15 {offsets = [0, 256], sizes = [16, 128], strides = [1, 1]} : vector<16x384xf32> to vector<16x128xf32>
    %38 = vector.extract_strided_slice %20 {offsets = [0, 256], sizes = [16, 128], strides = [1, 1]} : vector<16x384xf32> to vector<16x128xf32>
    %39 = arith.mulf %28, %38 : vector<16x128xf32>
    %40 = arith.addf %37, %39 : vector<16x128xf32>
    %41 = math.tanh %40 : vector<16x128xf32>
    %cst_20 = arith.constant 1.000000e+00 : f32
    %42 = vector.broadcast %cst_20 : f32 to vector<16x128xf32>
    %43 = arith.subf %42, %36 : vector<16x128xf32>
    %44 = arith.mulf %43, %41 : vector<16x128xf32>
    %45 = arith.mulf %36, %0 : vector<16x128xf32>
    %46 = arith.addf %44, %45 : vector<16x128xf32>
    %47 = arith.truncf %46 : vector<16x128xf32> to vector<16x128xbf16>
    %c0_21 = arith.constant 0 : index
    %c0_22 = arith.constant 0 : index
    %48 = vector.load %arg9[%c0_21, %c0_22] : memref<128x128xbf16, #tpu.memory_space<vmem>>, vector<128x128xbf16>
    %cst_23 = arith.constant dense<0.000000e+00> : vector<16x128xf32>
    %49 = tpu.matmul %47, %48, %cst_23 {dimension_numbers = #tpu.dot_dimension_numbers<[1], [0], [0], [1], [0, 0, 1, 1], [], []>} : vector<16x128xbf16>, vector<128x128xbf16>, vector<16x128xf32> -> vector<16x128xf32>
    %c0_24 = arith.constant 0 : index
    %c0_25 = arith.constant 0 : index
    %50 = vector.load %arg10[%c0_24, %c0_25] : memref<1x128xf32, #tpu.memory_space<vmem>>, vector<1x128xf32>
    %51 = vector.broadcast %50 : vector<1x128xf32> to vector<16x128xf32>
    %52 = arith.addf %49, %51 : vector<16x128xf32>
    %c0_26 = arith.constant 0 : index
    %c0_27 = arith.constant 0 : index
    %53 = vector.load %arg11[%c0_26, %c0_27] : memref<16x128xf32, #tpu.memory_space<vmem>>, vector<16x128xf32>
    tpu.vector_store %arg11[%c0_26, %c0_27], %52 {strides = array<i32>} : memref<16x128xf32, #tpu.memory_space<vmem>>, vector<16x128xf32>,
    %c0_28 = arith.constant 0 : index
    %c0_29 = arith.constant 0 : index
    %54 = vector.load %arg12[%c0_28, %c0_29] : memref<16x128xf32, #tpu.memory_space<vmem>>, vector<16x128xf32>
    tpu.vector_store %arg12[%c0_28, %c0_29], %46 {strides = array<i32>} : memref<16x128xf32, #tpu.memory_space<vmem>>, vector<16x128xf32>,
    return
  }
  func.func @transform_0(%arg0: i32) -> (i32, i32) {
    %c0_i32 = arith.constant 0 : i32
    %c0_i32_0 = arith.constant 0 : i32
    return %arg0, %c0_i32 : i32, i32
  }
  func.func @transform_1(%arg0: i32) -> (i32, i32) {
    %c0_i32 = arith.constant 0 : i32
    %c0_i32_0 = arith.constant 0 : i32
    return %arg0, %c0_i32 : i32, i32
  }
  func.func @transform_2(%arg0: i32) -> (i32, i32) {
    %c0_i32 = arith.constant 0 : i32
    %c0_i32_0 = arith.constant 0 : i32
    %c0_i32_1 = arith.constant 0 : i32
    return %c0_i32, %c0_i32_0 : i32, i32
  }
  func.func @transform_3(%arg0: i32) -> (i32, i32) {
    %c0_i32 = arith.constant 0 : i32
    %c0_i32_0 = arith.constant 0 : i32
    %c0_i32_1 = arith.constant 0 : i32
    return %c0_i32, %c0_i32_0 : i32, i32
  }
  func.func @transform_4(%arg0: i32) -> (i32, i32) {
    %c0_i32 = arith.constant 0 : i32
    %c0_i32_0 = arith.constant 0 : i32
    %c0_i32_1 = arith.constant 0 : i32
    return %c0_i32, %c0_i32_0 : i32, i32
  }
  func.func @transform_5(%arg0: i32) -> (i32, i32) {
    %c0_i32 = arith.constant 0 : i32
    %c0_i32_0 = arith.constant 0 : i32
    %c0_i32_1 = arith.constant 0 : i32
    return %c0_i32, %c0_i32_0 : i32, i32
  }
  func.func @transform_6(%arg0: i32) -> (i32, i32) {
    %c0_i32 = arith.constant 0 : i32
    %c0_i32_0 = arith.constant 0 : i32
    %c0_i32_1 = arith.constant 0 : i32
    return %c0_i32, %c0_i32_0 : i32, i32
  }
  func.func @transform_7(%arg0: i32) -> (i32, i32) {
    %c0_i32 = arith.constant 0 : i32
    %c0_i32_0 = arith.constant 0 : i32
    %c0_i32_1 = arith.constant 0 : i32
    return %c0_i32, %c0_i32_0 : i32, i32
  }
  func.func @transform_8(%arg0: i32) -> (i32, i32) {
    %c0_i32 = arith.constant 0 : i32
    %c0_i32_0 = arith.constant 0 : i32
    %c0_i32_1 = arith.constant 0 : i32
    return %c0_i32, %c0_i32_0 : i32, i32
  }
  func.func @transform_9(%arg0: i32) -> (i32, i32) {
    %c0_i32 = arith.constant 0 : i32
    %c0_i32_0 = arith.constant 0 : i32
    %c0_i32_1 = arith.constant 0 : i32
    return %c0_i32, %c0_i32_0 : i32, i32
  }
  func.func @transform_10(%arg0: i32) -> (i32, i32) {
    %c0_i32 = arith.constant 0 : i32
    %c0_i32_0 = arith.constant 0 : i32
    return %arg0, %c0_i32 : i32, i32
  }
  func.func @transform_11(%arg0: i32) -> (i32, i32) {
    %c0_i32 = arith.constant 0 : i32
    %c0_i32_0 = arith.constant 0 : i32
    return %arg0, %c0_i32 : i32, i32
  }
}

</mosaic_0001>

<llo_original>
// kernel: tpu_custom_call.1
$region0: #{tpu_custom_call.1}
  #allocation0 [shape = 'u32[]', space=smem, size = 0x4, offset = 0x4, fixed_abs, tag = 'smem constant byte address 0x4 - core index']
  #allocation1 [shape = 'u32[144,128]{1,0:T(1,128)}', space=vmem, size = 0x12000, scoped, tag = 'internal scratch']
  %s0 = inlined_call_operand.vmem [shape: bf16[16,30], index: 0, kind: input, shape index: {}]
  %s1 = inlined_call_operand.hbm [shape: f32[16,128], index: 1, kind: input, shape index: {}, may-alias: {1,11}]
  %s2 = inlined_call_operand.vmem [shape: bf16[30,128], index: 2, kind: input, shape index: {}]
  %s3 = inlined_call_operand.vmem [shape: f32[1,128], index: 3, kind: input, shape index: {}]
  %s4 = inlined_call_operand.hbm [shape: bf16[128,384], index: 4, kind: input, shape index: {}]
  %s5 = inlined_call_operand.vmem [shape: f32[1,384], index: 5, kind: input, shape index: {}]
  %s6 = inlined_call_operand.hbm [shape: bf16[128,384], index: 6, kind: input, shape index: {}]
  %s7 = inlined_call_operand.vmem [shape: f32[1,384], index: 7, kind: input, shape index: {}]
  %s8 = inlined_call_operand.hbm [shape: bf16[128,128], index: 8, kind: input, shape index: {}]
  %s9 = inlined_call_operand.vmem [shape: f32[1,128], index: 9, kind: input, shape index: {}]
  %s10 = inlined_call_operand.hbm [shape: f32[16,128], index: 10, kind: output, shape index: {0}]
  %s11 = inlined_call_operand.hbm [shape: f32[16,128], index: 11, kind: output, shape index: {1}, may-alias: {1,11}]
  %12 = xla_tuple %s10, %s11
  %s13 = sld [smem:[#allocation0]]
  $region74: #{tpu_custom_call.1} parent=0
    _
  %s15 = ssub.s32 1, %s13
  %s16 = scalar_select 0, %s15, %s13
  $region1: #{tpu_custom_call.1} parent=0
    #allocation2 [shape = 'u8[8192]{0}', space=vmem, size = 0x2000, scoped, tag = 'input window, operand 1, single buffered']
    #allocation3 [shape = 's32[1]{0}', space=sflag, size = 0x4, scoped, tag = 'scoped memory for tpu_custom_call.1']
    #allocation4 [shape = 's32[1]{0}', space=sflag, size = 0x4, scoped, tag = 'scoped memory for tpu_custom_call.1']
    #allocation5 [shape = 'u8[98304]{0}', space=vmem, size = 0x18000, scoped, tag = 'input window, operand 4, single buffered']
    #allocation6 [shape = 's32[1]{0}', space=sflag, size = 0x4, scoped, tag = 'scoped memory for tpu_custom_call.1']
    #allocation7 [shape = 'u8[98304]{0}', space=vmem, size = 0x18000, scoped, tag = 'input window, operand 6, single buffered']
    #allocation8 [shape = 'u8[32768]{0}', space=vmem, size = 0x8000, scoped, tag = 'input window, operand 8, single buffered']
    #allocation9 [shape = 's32[1]{0}', space=sflag, size = 0x4, scoped, tag = 'scoped memory for tpu_custom_call.1']
    #allocation10 [shape = 'u8[8192]{0}', space=vmem, size = 0x2000, scoped, tag = 'output window, operand 0, single buffered']
    #allocation11 [shape = 'u8[8192]{0}', space=vmem, size = 0x2000, scoped, tag = 'output window, operand 1, single buffered']
    #allocation12 [shape = 's32[1]{0}', space=sflag, size = 0x4, scoped, tag = 'scoped memory for tpu_custom_call.1']
    %17 = vsyncpa [#allocation3], 0
    %18 = vsyncpa [#allocation6], 0
    %19 = vsyncpa [#allocation9], 0
    %20 = vsyncpa [#allocation4], 0
    %21 = vsyncpa [#allocation12], 0
    // Predicated region
    $region2: #{tpu_custom_call.1} parent=1 // pred_check
      _
    $region3: #{tpu_custom_call.1} parent=1 // pred_check_branch
      %23 = sbr.rel (0) target = $region5
    $region4: #{tpu_custom_call.1} parent=1 // pred_region
      _
    $region5: #{tpu_custom_call.1} parent=1 // pred_fallthru
      _
    // Predicated region
    $region6: #{tpu_custom_call.1} parent=1 // pred_check
      _
    $region7: #{tpu_custom_call.1} parent=1 // pred_check_branch
      %25 = sbr.rel (0) target = $region9
    $region8: #{tpu_custom_call.1} parent=1 // pred_region
      %s27 = ssub.s32 256, 256
      %28 = vsyncadd [#allocation3], %s27
      %s29 = sshll.u32 [#allocation2], 4
      %s30 = int_to_ptr.vmem [resolvable:$true] %s29
      %35 = dma.hbm_to_vmem [thread:$0]  %s1, 256, %s30, [#allocation3], 128, 128, 8
    $region9: #{tpu_custom_call.1} parent=1 // pred_fallthru
      _
    // Predicated region
    $region10: #{tpu_custom_call.1} parent=1 // pred_check
      _
    $region11: #{tpu_custom_call.1} parent=1 // pred_check_branch
      %37 = sbr.rel (0) target = $region13
    $region12: #{tpu_custom_call.1} parent=1 // pred_region
      _
    $region13: #{tpu_custom_call.1} parent=1 // pred_fallthru
      _
    // Predicated region
    $region14: #{tpu_custom_call.1} parent=1 // pred_check
      _
    $region15: #{tpu_custom_call.1} parent=1 // pred_check_branch
      %39 = sbr.rel (0) target = $region17
    $region16: #{tpu_custom_call.1} parent=1 // pred_region
      _
    $region17: #{tpu_custom_call.1} parent=1 // pred_fallthru
      _
    // Predicated region
    $region18: #{tpu_custom_call.1} parent=1 // pred_check
      _
    $region19: #{tpu_custom_call.1} parent=1 // pred_check_branch
      %41 = sbr.rel (0) target = $region21
    $region20: #{tpu_custom_call.1} parent=1 // pred_region
      %s43 = ssub.s32 3072, 3072
      %44 = vsyncadd [#allocation6], %s43
      %s45 = sshll.u32 [#allocation5], 4
      %s46 = int_to_ptr.vmem [resolvable:$true] %s45
      %51 = dma.hbm_to_vmem [thread:$0]  %s4, 3072, %s46, [#allocation6], 192, 192, 12
    $region21: #{tpu_custom_call.1} parent=1 // pred_fallthru
      _
    // Predicated region
    $region22: #{tpu_custom_call.1} parent=1 // pred_check
      _
    $region23: #{tpu_custom_call.1} parent=1 // pred_check_branch
      %53 = sbr.rel (0) target = $region25
    $region24: #{tpu_custom_call.1} parent=1 // pred_region
      _
    $region25: #{tpu_custom_call.1} parent=1 // pred_fallthru
      _
    // Predicated region
    $region26: #{tpu_custom_call.1} parent=1 // pred_check
      _
    $region27: #{tpu_custom_call.1} parent=1 // pred_check_branch
      %55 = sbr.rel (0) target = $region29
    $region28: #{tpu_custom_call.1} parent=1 // pred_region
      %s57 = ssub.s32 3072, 3072
      %58 = vsyncadd [#allocation6], %s57
      %s59 = sshll.u32 [#allocation7], 4
      %s60 = int_to_ptr.vmem [resolvable:$true] %s59
      %65 = dma.hbm_to_vmem [thread:$0]  %s6, 3072, %s60, [#allocation6], 192, 192, 12
    $region29: #{tpu_custom_call.1} parent=1 // pred_fallthru
      _
    // Predicated region
    $region30: #{tpu_custom_call.1} parent=1 // pred_check
      _
    $region31: #{tpu_custom_call.1} parent=1 // pred_check_branch
      %67 = sbr.rel (0) target = $region33
    $region32: #{tpu_custom_call.1} parent=1 // pred_region
      _
    $region33: #{tpu_custom_call.1} parent=1 // pred_fallthru
      _
    // Predicated region
    $region34: #{tpu_custom_call.1} parent=1 // pred_check
      _
    $region35: #{tpu_custom_call.1} parent=1 // pred_check_branch
      %69 = sbr.rel (0) target = $region37
    $region36: #{tpu_custom_call.1} parent=1 // pred_region
      %s71 = ssub.s32 1024, 1024
      %72 = vsyncadd [#allocation9], %s71
      %s73 = sshll.u32 [#allocation8], 4
      %s74 = int_to_ptr.vmem [resolvable:$true] %s73
      %79 = dma.hbm_to_vmem [thread:$0]  %s8, 1024, %s74, [#allocation9], 64, 64, 4
    $region37: #{tpu_custom_call.1} parent=1 // pred_fallthru
      _
    // Predicated region
    $region38: #{tpu_custom_call.1} parent=1 // pred_check
      _
    $region39: #{tpu_custom_call.1} parent=1 // pred_check_branch
      %81 = sbr.rel (0) target = $region41
    $region40: #{tpu_custom_call.1} parent=1 // pred_region
      _
    $region41: #{tpu_custom_call.1} parent=1 // pred_fallthru
      _
    // Predicated region
    $region42: #{tpu_custom_call.1} parent=1 // pred_check
      _
    $region43: #{tpu_custom_call.1} parent=1 // pred_check_branch
      %83 = sbr.rel (0) target = $region45
    $region44: #{tpu_custom_call.1} parent=1 // pred_region
      %84 = dma.done [#allocation3], 256
    $region45: #{tpu_custom_call.1} parent=1 // pred_fallthru
      _
    // Predicated region
    $region46: #{tpu_custom_call.1} parent=1 // pred_check
      _
    $region47: #{tpu_custom_call.1} parent=1 // pred_check_branch
      %86 = sbr.rel (0) target = $region49
    $region48: #{tpu_custom_call.1} parent=1 // pred_region
      %87 = dma.done [#allocation6], 3072
    $region49: #{tpu_custom_call.1} parent=1 // pred_fallthru
      _
    // Predicated region
    $region50: #{tpu_custom_call.1} parent=1 // pred_check
      _
    $region51: #{tpu_custom_call.1} parent=1 // pred_check_branch
      %89 = sbr.rel (0) target = $region53
    $region52: #{tpu_custom_call.1} parent=1 // pred_region
      %90 = dma.done [#allocation6], 3072
    $region53: #{tpu_custom_call.1} parent=1 // pred_fallthru
      _
    // Predicated region
    $region54: #{tpu_custom_call.1} parent=1 // pred_check
      _
    $region55: #{tpu_custom_call.1} parent=1 // pred_check_branch
      %92 = sbr.rel (0) target = $region57
    $region56: #{tpu_custom_call.1} parent=1 // pred_region
      %93 = dma.done [#allocation9], 1024
    $region57: #{tpu_custom_call.1} parent=1 // pred_fallthru
      _
    %v95 = vld [vmem:[#allocation2] sm:$0xff]
    %v96 = vld [vmem:[#allocation2 + $0x8] sm:$0xff]
    %v97 = vpack.c.bf16 %v96, %v95
    %v98 = vld [vmem:[%s0] sm:$0xf]
    %v99 = vld [vmem:[%s0 + $0x4] sm:$0xf]
    %v100 = vld [vmem:[%s2] sm:$0xf]
    %v101 = vld [vmem:[%s2 + $0x4] sm:$0xf]
    %v102 = vld [vmem:[%s2 + $0x8] sm:$0xf]
    %v103 = vld [vmem:[%s2 + $0xc] sm:$0x7]
    %v104 = vld [vmem:[%s3] sm:$0x1]
    %v106 = vlaneseq
    %v107 = vshrl.u32 %v106, 7
    %v108 = vsub.s32 0, %v107
    %v109 = vrot.slane %v104, %v108
    %v113 = vunpack.c.l.b16 %v98
    %v114 = vunpack.c.l.b16 %v99
    %v115 = vpack.c.b16 %v114, %v113
    %v120 = vunpack.c.l.b16 %v100
    %v121 = vunpack.c.l.b16 %v101
    %v122 = vunpack.c.l.b16 %v102
    %v123 = vunpack.c.l.b16 %v103
    %v124 = vpack.c.b16 %v121, %v120
    %v125 = vpack.c.b16 %v123, %v122
    %vm127 = vcmask 244736
    %v129 = vsel %vm127, %v115, 0
    %vm131 = vcmask 1046528
    %v133 = vsel %vm131, %v125, 0
    %135 = vmatprep.subr.bf16.mxu0 0
    %136 = vmatpush1.bf16.msra.mxu0 %v124
    %137 = vmatprep.subr.bf16.mxu0 0
    %138 = vmatpush1.bf16.msra.mxu0 %v133
    %139 = vmatprep.subr.bf16.mxu0 0
    %140 = vmatpush1.bf16.msra.mxu0 0
    %141 = vmatprep.subr.bf16.mxu0 0
    %142 = vmatpush1.bf16.msra.mxu0 0
    %143 = vmatprep.subr.bf16.mxu0 0
    %144 = vmatpush1.bf16.msra.mxu0 0
    %145 = vmatprep.subr.bf16.mxu0 0
    %146 = vmatpush1.bf16.msra.mxu0 0
    %147 = vmatprep.subr.bf16.mxu0 0
    %148 = vmatpush1.bf16.msra.mxu0 0
    %149 = vmatprep.subr.bf16.mxu0 0
    %150 = vmatpush1.bf16.msra.mxu0 0
    %151 = vmatprep.subr.bf16.mxu0 0
    %152 = vmatpush1.bf16.msra.mxu0 0
    %153 = vmatprep.subr.bf16.mxu0 0
    %154 = vmatpush1.bf16.msra.mxu0 0
    %155 = vmatprep.subr.bf16.mxu0 0
    %156 = vmatpush1.bf16.msra.mxu0 0
    %157 = vmatprep.subr.bf16.mxu0 0
    %158 = vmatpush1.bf16.msra.mxu0 0
    %159 = vmatprep.subr.bf16.mxu0 0
    %160 = vmatpush1.bf16.msra.mxu0 0
    %161 = vmatprep.subr.bf16.mxu0 0
    %162 = vmatpush1.bf16.msra.mxu0 0
    %163 = vmatprep.subr.bf16.mxu0 0
    %164 = vmatpush1.bf16.msra.mxu0 0
    %165 = vmatprep.subr.bf16.mxu0 0
    %166 = vmatpush1.bf16.msra.mxu0 0
    %167 = vmatprep.mubr.bf16.mxu0 0
    %168 = vmatmul.mubr.bf16.gmra.mrb[0].mxu0 %v129
    %v169 = vpop.f32.mrb[0].mxu0
    %v170 = vadd.f32 %v109, %v169
    %v171 = vpop.f32.mrb[0].mxu0
    %v172 = vpop.f32.mrb[0].mxu0
    %v173 = vadd.f32 %v109, %v172
    %v174 = vpop.f32.mrb[0].mxu0
    %175 = vdwg.mxu0
    %v176 = vmax.f32 %v170, 0.0
    %v177 = vmax.f32 %v173, 0.0
    %v178 = vpack.c.bf16 %v177, %v176
    %v179 = vld [vmem:[#allocation5] sm:$0xff]
    %v180 = vld [vmem:[#allocation5 + $0x8] sm:$0xf]
    %v181 = vld [vmem:[#allocation5 + $0xc] sm:$0xff]
    %v182 = vld [vmem:[#allocation5 + $0x14] sm:$0xf]
    %v183 = vld [vmem:[#allocation5 + $0x18] sm:$0xff]
    %v184 = vld [vmem:[#allocation5 + $0x20] sm:$0xf]
    %v185 = vld [vmem:[#allocation5 + $0x24] sm:$0xff]
    %v186 = vld [vmem:[#allocation5 + $0x2c] sm:$0xf]
    %v187 = vld [vmem:[#allocation5 + $0x30] sm:$0xff]
    %v188 = vld [vmem:[#allocation5 + $0x38] sm:$0xf]
    %v189 = vld [vmem:[#allocation5 + $0x3c] sm:$0xff]
    %v190 = vld [vmem:[#allocation5 + $0x44] sm:$0xf]
    %v191 = vld [vmem:[#allocation5 + $0x48] sm:$0xff]
    %v192 = vld [vmem:[#allocation5 + $0x50] sm:$0xf]
    %v193 = vld [vmem:[#allocation5 + $0x54] sm:$0xff]
    %v194 = vld [vmem:[#allocation5 + $0x5c] sm:$0xf]
    %v195 = vld [vmem:[#allocation5 + $0x60] sm:$0xff]
    %v196 = vld [vmem:[#allocation5 + $0x68] sm:$0xf]
    %v197 = vld [vmem:[#allocation5 + $0x6c] sm:$0xff]
    %v198 = vld [vmem:[#allocation5 + $0x74] sm:$0xf]
    %v199 = vld [vmem:[#allocation5 + $0x78] sm:$0xff]
    %v200 = vld [vmem:[#allocation5 + $0x80] sm:$0xf]
    %v201 = vld [vmem:[#allocation5 + $0x84] sm:$0xff]
    %v202 = vld [vmem:[#allocation5 + $0x8c] sm:$0xf]
    %v203 = vld [vmem:[#allocation5 + $0x90] sm:$0xff]
    %v204 = vld [vmem:[#allocation5 + $0x98] sm:$0xf]
    %v205 = vld [vmem:[#allocation5 + $0x9c] sm:$0xff]
    %v206 = vld [vmem:[#allocation5 + $0xa4] sm:$0xf]
    %v207 = vld [vmem:[#allocation5 + $0xa8] sm:$0xff]
    %v208 = vld [vmem:[#allocation5 + $0xb0] sm:$0xf]
    %v209 = vld [vmem:[#allocation5 + $0xb4] sm:$0xff]
    %v210 = vld [vmem:[#allocation5 + $0xbc] sm:$0xf]
    %v211 = vld [vmem:[%s5] sm:$0x7]
    %v213 = vlaneseq
    %v214 = vshrl.u32 %v213, 7
    %v215 = vsub.s32 0, %v214
    %v216 = vrot.slane %v211, %v215
    %v217 = vlaneseq
    %v218 = vshrl.u32 %v217, 7
    %v219 = vsub.s32 1, %v218
    %v220 = vrot.slane %v211, %v219
    %v221 = vlaneseq
    %v222 = vshrl.u32 %v221, 7
    %v223 = vsub.s32 2, %v222
    %v224 = vrot.slane %v211, %v223
    %v260 = vunpack.c.l.b16 %v179
    %v261 = vunpack.c.h.b16 %v179
    %v262 = vunpack.c.l.b16 %v180
    %v263 = vunpack.c.l.b16 %v181
    %v264 = vunpack.c.h.b16 %v181
    %v265 = vunpack.c.l.b16 %v182
    %v266 = vunpack.c.l.b16 %v183
    %v267 = vunpack.c.h.b16 %v183
    %v268 = vunpack.c.l.b16 %v184
    %v269 = vunpack.c.l.b16 %v185
    %v270 = vunpack.c.h.b16 %v185
    %v271 = vunpack.c.l.b16 %v186
    %v272 = vunpack.c.l.b16 %v187
    %v273 = vunpack.c.h.b16 %v187
    %v274 = vunpack.c.l.b16 %v188
    %v275 = vunpack.c.l.b16 %v189
    %v276 = vunpack.c.h.b16 %v189
    %v277 = vunpack.c.l.b16 %v190
    %v278 = vunpack.c.l.b16 %v191
    %v279 = vunpack.c.h.b16 %v191
    %v280 = vunpack.c.l.b16 %v192
    %v281 = vunpack.c.l.b16 %v193
    %v282 = vunpack.c.h.b16 %v193
    %v283 = vunpack.c.l.b16 %v194
    %v284 = vunpack.c.l.b16 %v195
    %v285 = vunpack.c.h.b16 %v195
    %v286 = vunpack.c.l.b16 %v196
    %v287 = vunpack.c.l.b16 %v197
    %v288 = vunpack.c.h.b16 %v197
    %v289 = vunpack.c.l.b16 %v198
    %v290 = vunpack.c.l.b16 %v199
    %v291 = vunpack.c.h.b16 %v199
    %v292 = vunpack.c.l.b16 %v200
    %v293 = vunpack.c.l.b16 %v201
    %v294 = vunpack.c.h.b16 %v201
    %v295 = vunpack.c.l.b16 %v202
    %v296 = vunpack.c.l.b16 %v203
    %v297 = vunpack.c.h.b16 %v203
    %v298 = vunpack.c.l.b16 %v204
    %v299 = vunpack.c.l.b16 %v205
    %v300 = vunpack.c.h.b16 %v205
    %v301 = vunpack.c.l.b16 %v206
    %v302 = vunpack.c.l.b16 %v207
    %v303 = vunpack.c.h.b16 %v207
    %v304 = vunpack.c.l.b16 %v208
    %v305 = vunpack.c.l.b16 %v209
    %v306 = vunpack.c.h.b16 %v209
    %v307 = vunpack.c.l.b16 %v210
    %v308 = vpack.c.b16 %v263, %v260
    %v309 = vpack.c.b16 %v264, %v261
    %v310 = vpack.c.b16 %v265, %v262
    %v311 = vpack.c.b16 %v269, %v266
    %v312 = vpack.c.b16 %v270, %v267
    %v313 = vpack.c.b16 %v271, %v268
    %v314 = vpack.c.b16 %v275, %v272
    %v315 = vpack.c.b16 %v276, %v273
    %v316 = vpack.c.b16 %v277, %v274
    %v317 = vpack.c.b16 %v281, %v278
    %v318 = vpack.c.b16 %v282, %v279
    %v319 = vpack.c.b16 %v283, %v280
    %v320 = vpack.c.b16 %v287, %v284
    %v321 = vpack.c.b16 %v288, %v285
    %v322 = vpack.c.b16 %v289, %v286
    %v323 = vpack.c.b16 %v293, %v290
    %v324 = vpack.c.b16 %v294, %v291
    %v325 = vpack.c.b16 %v295, %v292
    %v326 = vpack.c.b16 %v299, %v296
    %v327 = vpack.c.b16 %v300, %v297
    %v328 = vpack.c.b16 %v301, %v298
    %v329 = vpack.c.b16 %v305, %v302
    %v330 = vpack.c.b16 %v306, %v303
    %v331 = vpack.c.b16 %v307, %v304
    %356 = vmatprep.subr.bf16.mxu0 %v309
    %357 = vmatpush1.bf16.msra.mxu0 %v308
    %358 = vmatprep.subr.bf16.mxu0 %v312
    %359 = vmatpush1.bf16.msra.mxu0 %v311
    %360 = vmatprep.subr.bf16.mxu0 %v315
    %361 = vmatpush1.bf16.msra.mxu0 %v314
    %362 = vmatprep.subr.bf16.mxu0 %v318
    %363 = vmatpush1.bf16.msra.mxu0 %v317
    %364 = vmatprep.subr.bf16.mxu0 %v321
    %365 = vmatpush1.bf16.msra.mxu0 %v320
    %366 = vmatprep.subr.bf16.mxu0 %v324
    %367 = vmatpush1.bf16.msra.mxu0 %v323
    %368 = vmatprep.subr.bf16.mxu0 %v327
    %369 = vmatpush1.bf16.msra.mxu0 %v326
    %370 = vmatprep.subr.bf16.mxu0 %v330
    %371 = vmatpush1.bf16.msra.mxu0 %v329
    %372 = vmatprep.subr.bf16.mxu0 0
    %373 = vmatpush1.bf16.msra.mxu0 0
    %374 = vmatprep.subr.bf16.mxu0 0
    %375 = vmatpush1.bf16.msra.mxu0 0
    %376 = vmatprep.subr.bf16.mxu0 0
    %377 = vmatpush1.bf16.msra.mxu0 0
    %378 = vmatprep.subr.bf16.mxu0 0
    %379 = vmatpush1.bf16.msra.mxu0 0
    %380 = vmatprep.subr.bf16.mxu0 0
    %381 = vmatpush1.bf16.msra.mxu0 0
    %382 = vmatprep.subr.bf16.mxu0 0
    %383 = vmatpush1.bf16.msra.mxu0 0
    %384 = vmatprep.subr.bf16.mxu0 0
    %385 = vmatpush1.bf16.msra.mxu0 0
    %386 = vmatprep.subr.bf16.mxu0 0
    %387 = vmatpush1.bf16.msra.mxu0 0
    %388 = vmatprep.mubr.bf16.mxu0 0
    %389 = vmatmul.mubr.bf16.gmra.mrb[0].mxu0 %v178
    %v390 = vpop.f32.mrb[0].mxu0
    %v391 = vadd.f32 %v216, %v390
    %v392 = vpop.f32.mrb[0].mxu0
    %v393 = vadd.f32 %v220, %v392
    %v394 = vpop.f32.mrb[0].mxu0
    %v395 = vadd.f32 %v216, %v394
    %v396 = vpop.f32.mrb[0].mxu0
    %v397 = vadd.f32 %v220, %v396
    %398 = vdwg.mxu0
    %399 = vmatprep.subr.bf16.mxu0 0
    %400 = vmatpush1.bf16.msra.mxu0 %v310
    %401 = vmatprep.subr.bf16.mxu0 0
    %402 = vmatpush1.bf16.msra.mxu0 %v313
    %403 = vmatprep.subr.bf16.mxu0 0
    %404 = vmatpush1.bf16.msra.mxu0 %v316
    %405 = vmatprep.subr.bf16.mxu0 0
    %406 = vmatpush1.bf16.msra.mxu0 %v319
    %407 = vmatprep.subr.bf16.mxu0 0
    %408 = vmatpush1.bf16.msra.mxu0 %v322
    %409 = vmatprep.subr.bf16.mxu0 0
    %410 = vmatpush1.bf16.msra.mxu0 %v325
    %411 = vmatprep.subr.bf16.mxu0 0
    %412 = vmatpush1.bf16.msra.mxu0 %v328
    %413 = vmatprep.subr.bf16.mxu0 0
    %414 = vmatpush1.bf16.msra.mxu0 %v331
    %415 = vmatprep.subr.bf16.mxu0 0
    %416 = vmatpush1.bf16.msra.mxu0 0
    %417 = vmatprep.subr.bf16.mxu0 0
    %418 = vmatpush1.bf16.msra.mxu0 0
    %419 = vmatprep.subr.bf16.mxu0 0
    %420 = vmatpush1.bf16.msra.mxu0 0
    %421 = vmatprep.subr.bf16.mxu0 0
    %422 = vmatpush1.bf16.msra.mxu0 0
    %423 = vmatprep.subr.bf16.mxu0 0
    %424 = vmatpush1.bf16.msra.mxu0 0
    %425 = vmatprep.subr.bf16.mxu0 0
    %426 = vmatpush1.bf16.msra.mxu0 0
    %427 = vmatprep.subr.bf16.mxu0 0
    %428 = vmatpush1.bf16.msra.mxu0 0
    %429 = vmatprep.subr.bf16.mxu0 0
    %430 = vmatpush1.bf16.msra.mxu0 0
    %431 = vmatprep.mubr.bf16.mxu0 0
    %432 = vmatmul.mubr.bf16.gmra.mrb[0].mxu0 %v178
    %v433 = vpop.f32.mrb[0].mxu0
    %v434 = vadd.f32 %v224, %v433
    %v435 = vpop.f32.mrb[0].mxu0
    %v436 = vpop.f32.mrb[0].mxu0
    %v437 = vadd.f32 %v224, %v436
    %v438 = vpop.f32.mrb[0].mxu0
    %439 = vdwg.mxu0
    %v440 = vld [vmem:[#allocation7] sm:$0xff]
    %v441 = vld [vmem:[#allocation7 + $0x8] sm:$0xf]
    %v442 = vld [vmem:[#allocation7 + $0xc] sm:$0xff]
    %v443 = vld [vmem:[#allocation7 + $0x14] sm:$0xf]
    %v444 = vld [vmem:[#allocation7 + $0x18] sm:$0xff]
    %v445 = vld [vmem:[#allocation7 + $0x20] sm:$0xf]
    %v446 = vld [vmem:[#allocation7 + $0x24] sm:$0xff]
    %v447 = vld [vmem:[#allocation7 + $0x2c] sm:$0xf]
    %v448 = vld [vmem:[#allocation7 + $0x30] sm:$0xff]
    %v449 = vld [vmem:[#allocation7 + $0x38] sm:$0xf]
    %v450 = vld [vmem:[#allocation7 + $0x3c] sm:$0xff]
    %v451 = vld [vmem:[#allocation7 + $0x44] sm:$0xf]
    %v452 = vld [vmem:[#allocation7 + $0x48] sm:$0xff]
    %v453 = vld [vmem:[#allocation7 + $0x50] sm:$0xf]
    %v454 = vld [vmem:[#allocation7 + $0x54] sm:$0xff]
    %v455 = vld [vmem:[#allocation7 + $0x5c] sm:$0xf]
    %v456 = vld [vmem:[#allocation7 + $0x60] sm:$0xff]
    %v457 = vld [vmem:[#allocation7 + $0x68] sm:$0xf]
    %v458 = vld [vmem:[#allocation7 + $0x6c] sm:$0xff]
    %v459 = vld [vmem:[#allocation7 + $0x74] sm:$0xf]
    %v460 = vld [vmem:[#allocation7 + $0x78] sm:$0xff]
    %v461 = vld [vmem:[#allocation7 + $0x80] sm:$0xf]
    %v462 = vld [vmem:[#allocation7 + $0x84] sm:$0xff]
    %v463 = vld [vmem:[#allocation7 + $0x8c] sm:$0xf]
    %v464 = vld [vmem:[#allocation7 + $0x90] sm:$0xff]
    %v465 = vld [vmem:[#allocation7 + $0x98] sm:$0xf]
    %v466 = vld [vmem:[#allocation7 + $0x9c] sm:$0xff]
    %v467 = vld [vmem:[#allocation7 + $0xa4] sm:$0xf]
    %v468 = vld [vmem:[#allocation7 + $0xa8] sm:$0xff]
    %v469 = vld [vmem:[#allocation7 + $0xb0] sm:$0xf]
    %v470 = vld [vmem:[#allocation7 + $0xb4] sm:$0xff]
    %v471 = vld [vmem:[#allocation7 + $0xbc] sm:$0xf]
    %v472 = vld [vmem:[%s7] sm:$0x7]
    %v474 = vlaneseq
    %v475 = vshrl.u32 %v474, 7
    %v476 = vsub.s32 0, %v475
    %v477 = vrot.slane %v472, %v476
    %v478 = vlaneseq
    %v479 = vshrl.u32 %v478, 7
    %v480 = vsub.s32 1, %v479
    %v481 = vrot.slane %v472, %v480
    %v482 = vlaneseq
    %v483 = vshrl.u32 %v482, 7
    %v484 = vsub.s32 2, %v483
    %v485 = vrot.slane %v472, %v484
    %v521 = vunpack.c.l.b16 %v440
    %v522 = vunpack.c.h.b16 %v440
    %v523 = vunpack.c.l.b16 %v441
    %v524 = vunpack.c.l.b16 %v442
    %v525 = vunpack.c.h.b16 %v442
    %v526 = vunpack.c.l.b16 %v443
    %v527 = vunpack.c.l.b16 %v444
    %v528 = vunpack.c.h.b16 %v444
    %v529 = vunpack.c.l.b16 %v445
    %v530 = vunpack.c.l.b16 %v446
    %v531 = vunpack.c.h.b16 %v446
    %v532 = vunpack.c.l.b16 %v447
    %v533 = vunpack.c.l.b16 %v448
    %v534 = vunpack.c.h.b16 %v448
    %v535 = vunpack.c.l.b16 %v449
    %v536 = vunpack.c.l.b16 %v450
    %v537 = vunpack.c.h.b16 %v450
    %v538 = vunpack.c.l.b16 %v451
    %v539 = vunpack.c.l.b16 %v452
    %v540 = vunpack.c.h.b16 %v452
    %v541 = vunpack.c.l.b16 %v453
    %v542 = vunpack.c.l.b16 %v454
    %v543 = vunpack.c.h.b16 %v454
    %v544 = vunpack.c.l.b16 %v455
    %v545 = vunpack.c.l.b16 %v456
    %v546 = vunpack.c.h.b16 %v456
    %v547 = vunpack.c.l.b16 %v457
    %v548 = vunpack.c.l.b16 %v458
    %v549 = vunpack.c.h.b16 %v458
    %v550 = vunpack.c.l.b16 %v459
    %v551 = vunpack.c.l.b16 %v460
    %v552 = vunpack.c.h.b16 %v460
    %v553 = vunpack.c.l.b16 %v461
    %v554 = vunpack.c.l.b16 %v462
    %v555 = vunpack.c.h.b16 %v462
    %v556 = vunpack.c.l.b16 %v463
    %v557 = vunpack.c.l.b16 %v464
    %v558 = vunpack.c.h.b16 %v464
    %v559 = vunpack.c.l.b16 %v465
    %v560 = vunpack.c.l.b16 %v466
    %v561 = vunpack.c.h.b16 %v466
    %v562 = vunpack.c.l.b16 %v467
    %v563 = vunpack.c.l.b16 %v468
    %v564 = vunpack.c.h.b16 %v468
    %v565 = vunpack.c.l.b16 %v469
    %v566 = vunpack.c.l.b16 %v470
    %v567 = vunpack.c.h.b16 %v470
    %v568 = vunpack.c.l.b16 %v471
    %v569 = vpack.c.b16 %v524, %v521
    %v570 = vpack.c.b16 %v525, %v522
    %v571 = vpack.c.b16 %v526, %v523
    %v572 = vpack.c.b16 %v530, %v527
    %v573 = vpack.c.b16 %v531, %v528
    %v574 = vpack.c.b16 %v532, %v529
    %v575 = vpack.c.b16 %v536, %v533
    %v576 = vpack.c.b16 %v537, %v534
    %v577 = vpack.c.b16 %v538, %v535
    %v578 = vpack.c.b16 %v542, %v539
    %v579 = vpack.c.b16 %v543, %v540
    %v580 = vpack.c.b16 %v544, %v541
    %v581 = vpack.c.b16 %v548, %v545
    %v582 = vpack.c.b16 %v549, %v546
    %v583 = vpack.c.b16 %v550, %v547
    %v584 = vpack.c.b16 %v554, %v551
    %v585 = vpack.c.b16 %v555, %v552
    %v586 = vpack.c.b16 %v556, %v553
    %v587 = vpack.c.b16 %v560, %v557
    %v588 = vpack.c.b16 %v561, %v558
    %v589 = vpack.c.b16 %v562, %v559
    %v590 = vpack.c.b16 %v566, %v563
    %v591 = vpack.c.b16 %v567, %v564
    %v592 = vpack.c.b16 %v568, %v565
    %617 = vmatprep.subr.bf16.mxu0 %v570
    %618 = vmatpush1.bf16.msra.mxu0 %v569
    %619 = vmatprep.subr.bf16.mxu0 %v573
    %620 = vmatpush1.bf16.msra.mxu0 %v572
    %621 = vmatprep.subr.bf16.mxu0 %v576
    %622 = vmatpush1.bf16.msra.mxu0 %v575
    %623 = vmatprep.subr.bf16.mxu0 %v579
    %624 = vmatpush1.bf16.msra.mxu0 %v578
    %625 = vmatprep.subr.bf16.mxu0 %v582
    %626 = vmatpush1.bf16.msra.mxu0 %v581
    %627 = vmatprep.subr.bf16.mxu0 %v585
    %628 = vmatpush1.bf16.msra.mxu0 %v584
    %629 = vmatprep.subr.bf16.mxu0 %v588
    %630 = vmatpush1.bf16.msra.mxu0 %v587
    %631 = vmatprep.subr.bf16.mxu0 %v591
    %632 = vmatpush1.bf16.msra.mxu0 %v590
    %633 = vmatprep.subr.bf16.mxu0 0
    %634 = vmatpush1.bf16.msra.mxu0 0
    %635 = vmatprep.subr.bf16.mxu0 0
    %636 = vmatpush1.bf16.msra.mxu0 0
    %637 = vmatprep.subr.bf16.mxu0 0
    %638 = vmatpush1.bf16.msra.mxu0 0
    %639 = vmatprep.subr.bf16.mxu0 0
    %640 = vmatpush1.bf16.msra.mxu0 0
    %641 = vmatprep.subr.bf16.mxu0 0
    %642 = vmatpush1.bf16.msra.mxu0 0
    %643 = vmatprep.subr.bf16.mxu0 0
    %644 = vmatpush1.bf16.msra.mxu0 0
    %645 = vmatprep.subr.bf16.mxu0 0
    %646 = vmatpush1.bf16.msra.mxu0 0
    %647 = vmatprep.subr.bf16.mxu0 0
    %648 = vmatpush1.bf16.msra.mxu0 0
    %649 = vmatprep.mubr.bf16.mxu0 0
    %650 = vmatmul.mubr.bf16.gmra.mrb[0].mxu0 %v97
    %v651 = vpop.f32.mrb[0].mxu0
    %v652 = vadd.f32 %v477, %v651
    %v653 = vpop.f32.mrb[0].mxu0
    %v654 = vadd.f32 %v481, %v653
    %v655 = vpop.f32.mrb[0].mxu0
    %v656 = vadd.f32 %v477, %v655
    %v657 = vpop.f32.mrb[0].mxu0
    %v658 = vadd.f32 %v481, %v657
    %659 = vdwg.mxu0
    %660 = vmatprep.subr.bf16.mxu0 0
    %661 = vmatpush1.bf16.msra.mxu0 %v571
    %662 = vmatprep.subr.bf16.mxu0 0
    %663 = vmatpush1.bf16.msra.mxu0 %v574
    %664 = vmatprep.subr.bf16.mxu0 0
    %665 = vmatpush1.bf16.msra.mxu0 %v577
    %666 = vmatprep.subr.bf16.mxu0 0
    %667 = vmatpush1.bf16.msra.mxu0 %v580
    %668 = vmatprep.subr.bf16.mxu0 0
    %669 = vmatpush1.bf16.msra.mxu0 %v583
    %670 = vmatprep.subr.bf16.mxu0 0
    %671 = vmatpush1.bf16.msra.mxu0 %v586
    %672 = vmatprep.subr.bf16.mxu0 0
    %673 = vmatpush1.bf16.msra.mxu0 %v589
    %674 = vmatprep.subr.bf16.mxu0 0
    %675 = vmatpush1.bf16.msra.mxu0 %v592
    %676 = vmatprep.subr.bf16.mxu0 0
    %677 = vmatpush1.bf16.msra.mxu0 0
    %678 = vmatprep.subr.bf16.mxu0 0
    %679 = vmatpush1.bf16.msra.mxu0 0
    %680 = vmatprep.subr.bf16.mxu0 0
    %681 = vmatpush1.bf16.msra.mxu0 0
    %682 = vmatprep.subr.bf16.mxu0 0
    %683 = vmatpush1.bf16.msra.mxu0 0
    %684 = vmatprep.subr.bf16.mxu0 0
    %685 = vmatpush1.bf16.msra.mxu0 0
    %686 = vmatprep.subr.bf16.mxu0 0
    %687 = vmatpush1.bf16.msra.mxu0 0
    %688 = vmatprep.subr.bf16.mxu0 0
    %689 = vmatpush1.bf16.msra.mxu0 0
    %690 = vmatprep.subr.bf16.mxu0 0
    %691 = vmatpush1.bf16.msra.mxu0 0
    %692 = vmatprep.mubr.bf16.mxu0 0
    %693 = vmatmul.mubr.bf16.gmra.mrb[0].mxu0 %v97
    %v694 = vpop.f32.mrb[0].mxu0
    %v695 = vadd.f32 %v485, %v694
    %v696 = vpop.f32.mrb[0].mxu0
    %v697 = vpop.f32.mrb[0].mxu0
    %v698 = vadd.f32 %v485, %v697
    %v699 = vpop.f32.mrb[0].mxu0
    %700 = vdwg.mxu0
    %v701 = vadd.f32 %v391, %v652
    %v702 = vadd.f32 %v395, %v656
    %v703 = vxor.u32 %v701, 2147483648
    %v704 = vxor.u32 %v702, 2147483648
    %v705 = vmul.f32 %v703, 1.442695
    %v706 = vpow.pop %v705
    %v707 = vmul.f32 %v704, 1.442695
    %v708 = vpow.pop %v707
    %v709 = vadd.f32 %v706, 1.0
    %v710 = vadd.f32 %v708, 1.0
    %v711 = vrcp.pop %v709
    %v712 = vmul.f32 1.0, %v711
    %v713 = vrcp.pop %v710
    %v714 = vmul.f32 1.0, %v713
    %v715 = vadd.f32 %v393, %v654
    %v716 = vadd.f32 %v397, %v658
    %v717 = vxor.u32 %v715, 2147483648
    %v718 = vxor.u32 %v716, 2147483648
    %v719 = vmul.f32 %v717, 1.442695
    %v720 = vpow.pop %v719
    %v721 = vmul.f32 %v718, 1.442695
    %v722 = vpow.pop %v721
    %v723 = vadd.f32 %v720, 1.0
    %v724 = vadd.f32 %v722, 1.0
    %v725 = vrcp.pop %v723
    %v726 = vmul.f32 1.0, %v725
    %v727 = vrcp.pop %v724
    %v728 = vmul.f32 1.0, %v727
    %v729 = vmul.f32 %v712, %v695
    %v730 = vmul.f32 %v714, %v698
    %v731 = vadd.f32 %v434, %v729
    %v732 = vadd.f32 %v437, %v730
    %v733 = vtanh.pop %v731
    %v734 = vtanh.pop %v732
    %v735 = vsub.f32 1.0, %v726
    %v736 = vsub.f32 1.0, %v728
    %v737 = vmul.f32 %v735, %v733
    %v738 = vmul.f32 %v736, %v734
    %v739 = vmul.f32 %v726, %v95
    %v740 = vmul.f32 %v728, %v96
    %v741 = vadd.f32 %v737, %v739
    %v742 = vadd.f32 %v738, %v740
    %v743 = vpack.c.bf16 %v742, %v741
    %v744 = vld [vmem:[#allocation8] sm:$0xf]
    %v745 = vld [vmem:[#allocation8 + $0x4] sm:$0xf]
    %v746 = vld [vmem:[#allocation8 + $0x8] sm:$0xf]
    %v747 = vld [vmem:[#allocation8 + $0xc] sm:$0xf]
    %v748 = vld [vmem:[#allocation8 + $0x10] sm:$0xf]
    %v749 = vld [vmem:[#allocation8 + $0x14] sm:$0xf]
    %v750 = vld [vmem:[#allocation8 + $0x18] sm:$0xf]
    %v751 = vld [vmem:[#allocation8 + $0x1c] sm:$0xf]
    %v752 = vld [vmem:[#allocation8 + $0x20] sm:$0xf]
    %v753 = vld [vmem:[#allocation8 + $0x24] sm:$0xf]
    %v754 = vld [vmem:[#allocation8 + $0x28] sm:$0xf]
    %v755 = vld [vmem:[#allocation8 + $0x2c] sm:$0xf]
    %v756 = vld [vmem:[#allocation8 + $0x30] sm:$0xf]
    %v757 = vld [vmem:[#allocation8 + $0x34] sm:$0xf]
    %v758 = vld [vmem:[#allocation8 + $0x38] sm:$0xf]
    %v759 = vld [vmem:[#allocation8 + $0x3c] sm:$0xf]
    %v760 = vld [vmem:[%s9] sm:$0x1]
    %v762 = vlaneseq
    %v763 = vshrl.u32 %v762, 7
    %v764 = vsub.s32 0, %v763
    %v765 = vrot.slane %v760, %v764
    %v783 = vunpack.c.l.b16 %v744
    %v784 = vunpack.c.l.b16 %v745
    %v785 = vunpack.c.l.b16 %v746
    %v786 = vunpack.c.l.b16 %v747
    %v787 = vunpack.c.l.b16 %v748
    %v788 = vunpack.c.l.b16 %v749
    %v789 = vunpack.c.l.b16 %v750
    %v790 = vunpack.c.l.b16 %v751
    %v791 = vunpack.c.l.b16 %v752
    %v792 = vunpack.c.l.b16 %v753
    %v793 = vunpack.c.l.b16 %v754
    %v794 = vunpack.c.l.b16 %v755
    %v795 = vunpack.c.l.b16 %v756
    %v796 = vunpack.c.l.b16 %v757
    %v797 = vunpack.c.l.b16 %v758
    %v798 = vunpack.c.l.b16 %v759
    %v799 = vpack.c.b16 %v784, %v783
    %v800 = vpack.c.b16 %v786, %v785
    %v801 = vpack.c.b16 %v788, %v787
    %v802 = vpack.c.b16 %v790, %v789
    %v803 = vpack.c.b16 %v792, %v791
    %v804 = vpack.c.b16 %v794, %v793
    %v805 = vpack.c.b16 %v796, %v795
    %v806 = vpack.c.b16 %v798, %v797
    %815 = vmatprep.subr.bf16.mxu0 0
    %816 = vmatpush1.bf16.msra.mxu0 %v799
    %817 = vmatprep.subr.bf16.mxu0 0
    %818 = vmatpush1.bf16.msra.mxu0 %v800
    %819 = vmatprep.subr.bf16.mxu0 0
    %820 = vmatpush1.bf16.msra.mxu0 %v801
    %821 = vmatprep.subr.bf16.mxu0 0
    %822 = vmatpush1.bf16.msra.mxu0 %v802
    %823 = vmatprep.subr.bf16.mxu0 0
    %824 = vmatpush1.bf16.msra.mxu0 %v803
    %825 = vmatprep.subr.bf16.mxu0 0
    %826 = vmatpush1.bf16.msra.mxu0 %v804
    %827 = vmatprep.subr.bf16.mxu0 0
    %828 = vmatpush1.bf16.msra.mxu0 %v805
    %829 = vmatprep.subr.bf16.mxu0 0
    %830 = vmatpush1.bf16.msra.mxu0 %v806
    %831 = vmatprep.subr.bf16.mxu0 0
    %832 = vmatpush1.bf16.msra.mxu0 0
    %833 = vmatprep.subr.bf16.mxu0 0
    %834 = vmatpush1.bf16.msra.mxu0 0
    %835 = vmatprep.subr.bf16.mxu0 0
    %836 = vmatpush1.bf16.msra.mxu0 0
    %837 = vmatprep.subr.bf16.mxu0 0
    %838 = vmatpush1.bf16.msra.mxu0 0
    %839 = vmatprep.subr.bf16.mxu0 0
    %840 = vmatpush1.bf16.msra.mxu0 0
    %841 = vmatprep.subr.bf16.mxu0 0
    %842 = vmatpush1.bf16.msra.mxu0 0
    %843 = vmatprep.subr.bf16.mxu0 0
    %844 = vmatpush1.bf16.msra.mxu0 0
    %845 = vmatprep.subr.bf16.mxu0 0
    %846 = vmatpush1.bf16.msra.mxu0 0
    %847 = vmatprep.mubr.bf16.mxu0 0
    %848 = vmatmul.mubr.bf16.gmra.mrb[0].mxu0 %v743
    %v849 = vpop.f32.mrb[0].mxu0
    %v850 = vadd.f32 %v765, %v849
    %v851 = vpop.f32.mrb[0].mxu0
    %v852 = vpop.f32.mrb[0].mxu0
    %v853 = vadd.f32 %v765, %v852
    %v854 = vpop.f32.mrb[0].mxu0
    %855 = vdwg.mxu0
    %856 = vst [vmem:[#allocation10] sm:$0xff] %v850
    %857 = vst [vmem:[#allocation10 + $0x8] sm:$0xff] %v853
    %858 = vst [vmem:[#allocation11] sm:$0xff] %v741
    %859 = vst [vmem:[#allocation11 + $0x8] sm:$0xff] %v742
    // Predicated region
    $region58: #{tpu_custom_call.1} parent=1 // pred_check
      _
    $region59: #{tpu_custom_call.1} parent=1 // pred_check_branch
      %861 = sbr.rel (0) target = $region61
    $region60: #{tpu_custom_call.1} parent=1 // pred_region
      %s863 = ssub.s32 256, 256
      %864 = vsyncadd [#allocation4], %s863
      %s865 = sshll.u32 [#allocation10], 4
      %s866 = int_to_ptr.vmem [resolvable:$true] %s865
      %871 = dma.vmem_to_hbm [thread:$0]  %s866, 256, %s10, [#allocation4], 128, 128, 8
    $region61: #{tpu_custom_call.1} parent=1 // pred_fallthru
      _
    // Predicated region
    $region62: #{tpu_custom_call.1} parent=1 // pred_check
      _
    $region63: #{tpu_custom_call.1} parent=1 // pred_check_branch
      %873 = sbr.rel (0) target = $region65
    $region64: #{tpu_custom_call.1} parent=1 // pred_region
      %s875 = ssub.s32 256, 256
      %876 = vsyncadd [#allocation12], %s875
      %s877 = sshll.u32 [#allocation11], 4
      %s878 = int_to_ptr.vmem [resolvable:$true] %s877
      %883 = dma.vmem_to_hbm [thread:$0]  %s878, 256, %s11, [#allocation12], 128, 128, 8
    $region65: #{tpu_custom_call.1} parent=1 // pred_fallthru
      _
    // Predicated region
    $region66: #{tpu_custom_call.1} parent=1 // pred_check
      _
    $region67: #{tpu_custom_call.1} parent=1 // pred_check_branch
      %885 = sbr.rel (0) target = $region69
    $region68: #{tpu_custom_call.1} parent=1 // pred_region
      %886 = dma.done [#allocation4], 256
    $region69: #{tpu_custom_call.1} parent=1 // pred_fallthru
      _
    // Predicated region
    $region70: #{tpu_custom_call.1} parent=1 // pred_check
      _
    $region71: #{tpu_custom_call.1} parent=1 // pred_check_branch
      %888 = sbr.rel (0) target = $region73
    $region72: #{tpu_custom_call.1} parent=1 // pred_region
      %889 = dma.done [#allocation12], 256
    $region73: #{tpu_custom_call.1} parent=1 // pred_fallthru
      _
    %890 = vsyncpa [#allocation3], 1
    %891 = vsyncpa [#allocation6], 1
    %892 = vsyncpa [#allocation9], 1
    %893 = vsyncpa [#allocation4], 1
    %894 = vsyncpa [#allocation12], 1

</llo_original>
